<compile_context>
chip_gen: v6e
topology: v6e:2x2x1
jax: 0.10.0
libtpu: 0.0.40
codegen_flags: <defaults>
</compile_context>

<pallas_src>
import functools

import jax
import jax.numpy as jnp
from jax import lax
from jax.experimental import pallas as pl
from jax.experimental.pallas import tpu as pltpu


def _round_up(x, m):
    return (x + m - 1) // m * m


def _vmem_tile_budget():
    """Per-stage VMEM budget for the tiled working set, adapted to the chip."""
    try:
        cap = int(pltpu.get_tpu_info().vmem_capacity_bytes)
    except Exception:  # older jax or no query support -> assume the small part
        cap = 64 << 20
    # ~3/8 of physical VMEM, clamped: ~24 MiB on v7x (64 MiB/TC), 48 MiB on v5e/v6e.
    return max(16 << 20, min(48 << 20, (cap * 3) // 8))


def _pick_lane_tile(n_out, resident_bytes, cout, out_bytes, budget_bytes):
    """Largest 128-multiple lane tile that divides n_out, fits the VMEM budget,
    and (when possible) leaves >= 2 grid steps for pipelining / megacore."""
    per_col = cout * (2 * out_bytes + 4)            # double-buffered out + f32 acc
    avail = max(budget_bytes - resident_bytes, 1 << 20)
    cap = max(128, min(4096, (avail // per_col) // 128 * 128))
    q = n_out // 128
    best = 1
    for d in range(1, q + 1):
        if q % d != 0 or 128 * d > cap:
            continue
        if q >= 2 and q // d < 2:                   # keep the grid >= 2 steps
            continue
        best = d
    return 128 * best


def _stage_kernel(slab_ref, w_ref, scale_ref, shift_ref, o_ref, *,
                  K, s, Wr, tn, tn_ext):
    """Fused conv(K, stride=s) + eval BatchNorm + LeakyReLU(0.2), one lane tile.

    slab_ref  : (s*s, Cin_p, n_slab) bf16  space-to-depth phases of padded input
    w_ref     : (K*K, Cout, Cin_p)   bf16  per-tap weight matrices
    scale_ref : (Cout, 1)            f32   folded BN scale
    shift_ref : (Cout, 1)            f32   folded conv-bias + BN shift
    o_ref     : (Cout, tn)                 lane-dense output tile
    """
    base = pl.multiple_of(pl.program_id(0) * tn, 128)
    cout = o_ref.shape[0]
    acc = jnp.zeros((cout, tn), jnp.float32)
    for kh in range(K):
        for kw in range(K):
            p = (kh % s) * s + (kw % s)          # stride phase feeding this tap
            off = (kh // s) * Wr + (kw // s)     # static halo shift on lane axis
            win = slab_ref[p, :, pl.ds(base, tn_ext)]   # 128-aligned dynamic read
            acc = acc + jnp.dot(w_ref[kh * K + kw], win[:, off:off + tn],
                                preferred_element_type=jnp.float32)
    y = acc * scale_ref[...] + shift_ref[...]            # conv bias + BN fused
    o_ref[...] = jnp.where(y > 0, y, 0.2 * y).astype(o_ref.dtype)


def _conv_bn_lrelu(x, w, b, gamma, beta, mean, var, *, stride, padding_mode,
                   eps=1e-5, out_dtype=None):
    """One Encoder stage: (pad ->) conv(K, stride) -> BN(eval) -> LeakyReLU(0.2)."""
    B, Cin, H, W = x.shape
    Cout, _, K, _ = w.shape
    s = stride
    to_pad = (K - 1) // 2

    # --- padding (reflection == nn.ReflectionPad2d, zero == Conv2d padding) --
    pad_cfg = ((0, 0), (0, 0), (to_pad, to_pad), (to_pad, to_pad))
    if padding_mode == 'reflection':
        x_pad = jnp.pad(x, pad_cfg, mode='reflect')
    else:
        x_pad = jnp.pad(x, pad_cfg, mode='constant')
    x_pad = x_pad.astype(jnp.bfloat16)                 # MXU operand dtype
    Hp, Wp = x_pad.shape[2], x_pad.shape[3]
    Ho = (Hp - K) // s + 1
    Wo = (Wp - K) // s + 1

    # --- space-to-depth "stride phase" slab (~1x bytes, replaces im2col) -----
    # slab[(rh*s+rw), ci, (b*Hr + i)*Wr + j] = x_pad[b, ci, i*s+rh, j*s+rw]
    dmax = (K - 1) // s                      # max tap shift in phase coordinates
    Hr, Wr = Ho + dmax, Wo + dmax            # output grid incl. halo rows/cols
    cin_p = _round_up(Cin, 8)                # aligned contraction depth
    x_ext = jnp.pad(x_pad, ((0, 0), (0, cin_p - Cin),
                            (0, max(0, Hr * s - Hp)), (0, max(0, Wr * s - Wp))))
    xr = x_ext[:, :, :Hr * s, :Wr * s].reshape(B, cin_p, Hr, s, Wr, s)
    slab = xr.transpose(3, 5, 1, 0, 2, 4).reshape(s * s, cin_p, B * Hr * Wr)

    n_real = B * Hr * Wr
    n_out = _round_up(n_real, 128)           # pad lanes to 128 only (no tile roundup)
    max_off = dmax * Wr + dmax
    halo = _round_up(max(max_off, 1), 128)
    n_slab = n_out + halo
    slab = jnp.pad(slab, ((0, 0), (0, 0), (0, n_slab - n_real)))

    # per-tap weights (K*K, Cout, Cin_p) in bf16
    w_taps = w.transpose(2, 3, 0, 1).reshape(K * K, Cout, Cin)
    w_taps = jnp.pad(w_taps, ((0, 0), (0, 0), (0, cin_p - Cin))).astype(jnp.bfloat16)

    # conv bias + eval-mode BatchNorm folded into per-channel scale / shift (f32)
    scale = (gamma.astype(jnp.float32) /
             jnp.sqrt(var.astype(jnp.float32) + eps))
    shift = beta.astype(jnp.float32) - scale * mean.astype(jnp.float32)
    if b is not None:
        shift = shift + scale * b.astype(jnp.float32)
    scale2 = scale[:, None]
    shift2 = shift[:, None]

    out_dtype = x.dtype if out_dtype is None else out_dtype
    out_bytes = jnp.dtype(out_dtype).itemsize

    # --- VMEM accounting, lane-tile / grid selection --------------------------
    slab_bytes = slab.size * slab.dtype.itemsize
    w_bytes = w_taps.size * w_taps.dtype.itemsize
    ss_bytes = (scale2.size + shift2.size) * 4
    resident = 2 * (slab_bytes + w_bytes + ss_bytes)   # conservatively 2-buffered
    budget = _vmem_tile_budget()
    tn = _pick_lane_tile(n_out, resident, Cout, out_bytes, budget)
    tn_ext = tn + halo
    grid = n_out // tn
    per_tile = Cout * tn * (2 * out_bytes + 4) + (s * s) * cin_p * tn_ext * 4
    vmem_need = resident + per_tile
    vmem_limit = int(min(2 * budget, max(32 << 20, vmem_need + (2 << 20))))

    cost = pl.CostEstimate(
        flops=2 * Cout * cin_p * K * K * n_out + 4 * Cout * n_out,
        transcendentals=0,
        bytes_accessed=slab_bytes + w_bytes + ss_bytes + Cout * n_out * out_bytes)

    kernel = functools.partial(_stage_kernel, K=K, s=s, Wr=Wr, tn=tn, tn_ext=tn_ext)
    out = pl.pallas_call(
        kernel,
        out_shape=jax.ShapeDtypeStruct((Cout, n_out), out_dtype),
        grid_spec=pltpu.PrefetchScalarGridSpec(
            num_scalar_prefetch=0,
            grid=(grid,),
            in_specs=[
                pl.BlockSpec((s * s, cin_p, n_slab), lambda i: (0, 0, 0)),  # resident slab
                pl.BlockSpec((K * K, Cout, cin_p), lambda i: (0, 0, 0)),    # resident weights
                pl.BlockSpec((Cout, 1), lambda i: (0, 0)),                  # BN scale
                pl.BlockSpec((Cout, 1), lambda i: (0, 0)),                  # BN shift
            ],
            out_specs=pl.BlockSpec((Cout, tn), lambda i: (0, i)),
        ),
        compiler_params=pltpu.CompilerParams(
            dimension_semantics=("parallel",),
            vmem_limit_bytes=vmem_limit),
        cost_estimate=cost,
    )(slab, w_taps, scale2, shift2)

    # drop halo / lane-padding columns and return NCHW
    out = out[:, :n_real].reshape(Cout, B, Hr, Wr)[:, :, :Ho, :Wo]
    return out.transpose(1, 0, 2, 3)


def encoder_forward(x, params, *, padding_mode='reflection'):
    """Forward pass of the PyTorch Encoder module (inference-mode BatchNorm)."""
    y = _conv_bn_lrelu(x, params['w1'], params.get('b1'), params['g1'],
                       params['beta1'], params['m1'], params['v1'],
                       stride=2, padding_mode=padding_mode,
                       out_dtype=jnp.bfloat16)        # bf16 intermediate (1x HBM)
    y = _conv_bn_lrelu(y, params['w2'], params.get('b2'), params['g2'],
                       params['beta2'], params['m2'], params['v2'],
                       stride=1, padding_mode=padding_mode,
                       out_dtype=x.dtype)
    return y


def _reference(x, params, *, kernel_size, padding_mode, eps=1e-5):
    """Pure-JAX f32 reference mirroring the PyTorch Encoder (eval-mode BN)."""
    to_pad = (kernel_size - 1) // 2

    def stage(x, w, b, g, beta, m, v, stride):
        if padding_mode == 'reflection':
            xp = jnp.pad(x, ((0, 0), (0, 0), (to_pad,) * 2, (to_pad,) * 2),
                         mode='reflect')
            pads = 'VALID'
        else:
            xp = x
            pads = [(to_pad, to_pad), (to_pad, to_pad)]
        y = lax.conv_general_dilated(xp, w, window_strides=(stride, stride),
                                     padding=pads,
                                     dimension_numbers=('NCHW', 'OIHW', 'NCHW'))
        if b is not None:
            y = y + b[None, :, None, None]
        s = (g / jnp.sqrt(v + eps))[None, :, None, None]
        y = (y - m[None, :, None, None]) * s + beta[None, :, None, None]
        return jnp.where(y > 0, y, 0.2 * y)

    y = stage(x, params['w1'], params.get('b1'), params['g1'], params['beta1'],
              params['m1'], params['v1'], 2)
    y = stage(y, params['w2'], params.get('b2'), params['g2'], params['beta2'],
              params['m2'], params['v2'], 1)
    return y


if __name__ == "__main__":
    key = jax.random.PRNGKey(0)
    ks = jax.random.split(key, 14)

    # Small shapes consistent with the module: in=4, out=32, 16x16, k=3, bias.
    B, Cin, Cout, H, W, K = 2, 4, 32, 16, 16, 3
    x = jax.random.normal(ks[0], (B, Cin, H, W), dtype=jnp.float32)
    params = dict(
        w1=jax.random.normal(ks[1], (Cout, Cin, K, K), jnp.float32) * 0.1,
        b1=jax.random.normal(ks[2], (Cout,), jnp.float32) * 0.1,
        g1=1.0 + 0.1 * jax.random.normal(ks[3], (Cout,), jnp.float32),
        beta1=0.1 * jax.random.normal(ks[4], (Cout,), jnp.float32),
        m1=0.1 * jax.random.normal(ks[5], (Cout,), jnp.float32),
        v1=1.0 + 0.5 * jax.random.uniform(ks[6], (Cout,), jnp.float32),
        w2=jax.random.normal(ks[7], (Cout, Cout, K, K), jnp.float32) * 0.1,
        b2=jax.random.normal(ks[8], (Cout,), jnp.float32) * 0.1,
        g2=1.0 + 0.1 * jax.random.normal(ks[9], (Cout,), jnp.float32),
        beta2=0.1 * jax.random.normal(ks[10], (Cout,), jnp.float32),
        m2=0.1 * jax.random.normal(ks[11], (Cout,), jnp.float32),
        v2=1.0 + 0.5 * jax.random.uniform(ks[12], (Cout,), jnp.float32),
    )

    for mode in ("reflection", "zero"):
        out = encoder_forward(x, params, padding_mode=mode)
        jax.block_until_ready(out)
        ref = _reference(x, params, kernel_size=K, padding_mode=mode)
        assert out.shape == ref.shape, (mode, out.shape, ref.shape)
        # Tolerance sized for bf16 MXU operands + bf16 stage-1 intermediate
        # against the all-f32 reference.
        assert jnp.allclose(out, ref, atol=3e-2, rtol=3e-2), (
            mode, float(jnp.max(jnp.abs(out - ref))))

    print("KERNEL_OK")
</pallas_src>

<mosaic_0001>
module attributes {stable_mosaic.version = 11 : i64} {
  func.func @_stage_kernel(%arg0: i32, %arg1: memref<4x8x384xbf16, #tpu.memory_space<vmem>>, %arg2: memref<9x32x8xbf16, #tpu.memory_space<vmem>>, %arg3: memref<32x1xf32, #tpu.memory_space<vmem>>, %arg4: memref<32x1xf32, #tpu.memory_space<vmem>>, %arg5: memref<32x128xbf16, #tpu.memory_space<vmem>>) attributes {dimension_semantics = [#tpu.dimension_semantics<parallel>], iteration_bounds = array<i64: 2>, scalar_prefetch = 0 : i64, scratch_operands = 0 : i64, tpu.core_type = #tpu.core_type<tc>, window_params = [{pipeline_mode = #tpu.pipeline_mode<synchronous>, transform_indices = @transform_0, window_bounds = array<i64: 4, 8, 384>}, {pipeline_mode = #tpu.pipeline_mode<synchronous>, transform_indices = @transform_1, window_bounds = array<i64: 9, 32, 8>}, {pipeline_mode = #tpu.pipeline_mode<synchronous>, transform_indices = @transform_2, window_bounds = array<i64: 32, 1>}, {pipeline_mode = #tpu.pipeline_mode<synchronous>, transform_indices = @transform_3, window_bounds = array<i64: 32, 1>}, {transform_indices = @transform_4, window_bounds = array<i64: 32, 128>}]} {
    %c128_i32 = arith.constant 128 : i32
    %0 = arith.muli %arg0, %c128_i32 : i32
    %1 = tpu.assume_multiple %0, 128 : i32
    %cst = arith.constant 0.000000e+00 : f32
    %2 = vector.broadcast %cst : f32 to vector<32x128xf32>
    %c0 = arith.constant 0 : index
    %c0_0 = arith.constant 0 : index
    %3 = arith.index_cast %1 : i32 to index
    %4 = vector.load %arg1[%c0, %c0_0, %3] : memref<4x8x384xbf16, #tpu.memory_space<vmem>>, vector<1x8x256xbf16>
    %5 = vector.shape_cast %4 : vector<1x8x256xbf16> to vector<8x256xbf16>
    %c0_1 = arith.constant 0 : index
    %c0_2 = arith.constant 0 : index
    %c0_3 = arith.constant 0 : index
    %6 = vector.load %arg2[%c0_1, %c0_2, %c0_3] : memref<9x32x8xbf16, #tpu.memory_space<vmem>>, vector<1x32x8xbf16>
    %7 = vector.shape_cast %6 : vector<1x32x8xbf16> to vector<32x8xbf16>
    %8 = vector.extract_strided_slice %5 {offsets = [0, 0], sizes = [8, 128], strides = [1, 1]} : vector<8x256xbf16> to vector<8x128xbf16>
    %cst_4 = arith.constant dense<0.000000e+00> : vector<32x128xf32>
    %9 = tpu.matmul %7, %8, %cst_4 {dimension_numbers = #tpu.dot_dimension_numbers<[1], [0], [0], [1], [0, 0, 1, 1], [], []>} : vector<32x8xbf16>, vector<8x128xbf16>, vector<32x128xf32> -> vector<32x128xf32>
    %10 = arith.addf %2, %9 : vector<32x128xf32>
    %c1 = arith.constant 1 : index
    %c0_5 = arith.constant 0 : index
    %11 = arith.index_cast %1 : i32 to index
    %12 = vector.load %arg1[%c1, %c0_5, %11] : memref<4x8x384xbf16, #tpu.memory_space<vmem>>, vector<1x8x256xbf16>
    %13 = vector.shape_cast %12 : vector<1x8x256xbf16> to vector<8x256xbf16>
    %c1_6 = arith.constant 1 : index
    %c0_7 = arith.constant 0 : index
    %c0_8 = arith.constant 0 : index
    %14 = vector.load %arg2[%c1_6, %c0_7, %c0_8] : memref<9x32x8xbf16, #tpu.memory_space<vmem>>, vector<1x32x8xbf16>
    %15 = vector.shape_cast %14 : vector<1x32x8xbf16> to vector<32x8xbf16>
    %16 = vector.extract_strided_slice %13 {offsets = [0, 0], sizes = [8, 128], strides = [1, 1]} : vector<8x256xbf16> to vector<8x128xbf16>
    %cst_9 = arith.constant dense<0.000000e+00> : vector<32x128xf32>
    %17 = tpu.matmul %15, %16, %cst_9 {dimension_numbers = #tpu.dot_dimension_numbers<[1], [0], [0], [1], [0, 0, 1, 1], [], []>} : vector<32x8xbf16>, vector<8x128xbf16>, vector<32x128xf32> -> vector<32x128xf32>
    %18 = arith.addf %10, %17 : vector<32x128xf32>
    %c0_10 = arith.constant 0 : index
    %c0_11 = arith.constant 0 : index
    %19 = arith.index_cast %1 : i32 to index
    %20 = vector.load %arg1[%c0_10, %c0_11, %19] : memref<4x8x384xbf16, #tpu.memory_space<vmem>>, vector<1x8x256xbf16>
    %21 = vector.shape_cast %20 : vector<1x8x256xbf16> to vector<8x256xbf16>
    %c2 = arith.constant 2 : index
    %c0_12 = arith.constant 0 : index
    %c0_13 = arith.constant 0 : index
    %22 = vector.load %arg2[%c2, %c0_12, %c0_13] : memref<9x32x8xbf16, #tpu.memory_space<vmem>>, vector<1x32x8xbf16>
    %23 = vector.shape_cast %22 : vector<1x32x8xbf16> to vector<32x8xbf16>
    %24 = vector.extract_strided_slice %21 {offsets = [0, 1], sizes = [8, 128], strides = [1, 1]} : vector<8x256xbf16> to vector<8x128xbf16>
    %cst_14 = arith.constant dense<0.000000e+00> : vector<32x128xf32>
    %25 = tpu.matmul %23, %24, %cst_14 {dimension_numbers = #tpu.dot_dimension_numbers<[1], [0], [0], [1], [0, 0, 1, 1], [], []>} : vector<32x8xbf16>, vector<8x128xbf16>, vector<32x128xf32> -> vector<32x128xf32>
    %26 = arith.addf %18, %25 : vector<32x128xf32>
    %c2_15 = arith.constant 2 : index
    %c0_16 = arith.constant 0 : index
    %27 = arith.index_cast %1 : i32 to index
    %28 = vector.load %arg1[%c2_15, %c0_16, %27] : memref<4x8x384xbf16, #tpu.memory_space<vmem>>, vector<1x8x256xbf16>
    %29 = vector.shape_cast %28 : vector<1x8x256xbf16> to vector<8x256xbf16>
    %c3 = arith.constant 3 : index
    %c0_17 = arith.constant 0 : index
    %c0_18 = arith.constant 0 : index
    %30 = vector.load %arg2[%c3, %c0_17, %c0_18] : memref<9x32x8xbf16, #tpu.memory_space<vmem>>, vector<1x32x8xbf16>
    %31 = vector.shape_cast %30 : vector<1x32x8xbf16> to vector<32x8xbf16>
    %32 = vector.extract_strided_slice %29 {offsets = [0, 0], sizes = [8, 128], strides = [1, 1]} : vector<8x256xbf16> to vector<8x128xbf16>
    %cst_19 = arith.constant dense<0.000000e+00> : vector<32x128xf32>
    %33 = tpu.matmul %31, %32, %cst_19 {dimension_numbers = #tpu.dot_dimension_numbers<[1], [0], [0], [1], [0, 0, 1, 1], [], []>} : vector<32x8xbf16>, vector<8x128xbf16>, vector<32x128xf32> -> vector<32x128xf32>
    %34 = arith.addf %26, %33 : vector<32x128xf32>
    %c3_20 = arith.constant 3 : index
    %c0_21 = arith.constant 0 : index
    %35 = arith.index_cast %1 : i32 to index
    %36 = vector.load %arg1[%c3_20, %c0_21, %35] : memref<4x8x384xbf16, #tpu.memory_space<vmem>>, vector<1x8x256xbf16>
    %37 = vector.shape_cast %36 : vector<1x8x256xbf16> to vector<8x256xbf16>
    %c4 = arith.constant 4 : index
    %c0_22 = arith.constant 0 : index
    %c0_23 = arith.constant 0 : index
    %38 = vector.load %arg2[%c4, %c0_22, %c0_23] : memref<9x32x8xbf16, #tpu.memory_space<vmem>>, vector<1x32x8xbf16>
    %39 = vector.shape_cast %38 : vector<1x32x8xbf16> to vector<32x8xbf16>
    %40 = vector.extract_strided_slice %37 {offsets = [0, 0], sizes = [8, 128], strides = [1, 1]} : vector<8x256xbf16> to vector<8x128xbf16>
    %cst_24 = arith.constant dense<0.000000e+00> : vector<32x128xf32>
    %41 = tpu.matmul %39, %40, %cst_24 {dimension_numbers = #tpu.dot_dimension_numbers<[1], [0], [0], [1], [0, 0, 1, 1], [], []>} : vector<32x8xbf16>, vector<8x128xbf16>, vector<32x128xf32> -> vector<32x128xf32>
    %42 = arith.addf %34, %41 : vector<32x128xf32>
    %c2_25 = arith.constant 2 : index
    %c0_26 = arith.constant 0 : index
    %43 = arith.index_cast %1 : i32 to index
    %44 = vector.load %arg1[%c2_25, %c0_26, %43] : memref<4x8x384xbf16, #tpu.memory_space<vmem>>, vector<1x8x256xbf16>
    %45 = vector.shape_cast %44 : vector<1x8x256xbf16> to vector<8x256xbf16>
    %c5 = arith.constant 5 : index
    %c0_27 = arith.constant 0 : index
    %c0_28 = arith.constant 0 : index
    %46 = vector.load %arg2[%c5, %c0_27, %c0_28] : memref<9x32x8xbf16, #tpu.memory_space<vmem>>, vector<1x32x8xbf16>
    %47 = vector.shape_cast %46 : vector<1x32x8xbf16> to vector<32x8xbf16>
    %48 = vector.extract_strided_slice %45 {offsets = [0, 1], sizes = [8, 128], strides = [1, 1]} : vector<8x256xbf16> to vector<8x128xbf16>
    %cst_29 = arith.constant dense<0.000000e+00> : vector<32x128xf32>
    %49 = tpu.matmul %47, %48, %cst_29 {dimension_numbers = #tpu.dot_dimension_numbers<[1], [0], [0], [1], [0, 0, 1, 1], [], []>} : vector<32x8xbf16>, vector<8x128xbf16>, vector<32x128xf32> -> vector<32x128xf32>
    %50 = arith.addf %42, %49 : vector<32x128xf32>
    %c0_30 = arith.constant 0 : index
    %c0_31 = arith.constant 0 : index
    %51 = arith.index_cast %1 : i32 to index
    %52 = vector.load %arg1[%c0_30, %c0_31, %51] : memref<4x8x384xbf16, #tpu.memory_space<vmem>>, vector<1x8x256xbf16>
    %53 = vector.shape_cast %52 : vector<1x8x256xbf16> to vector<8x256xbf16>
    %c6 = arith.constant 6 : index
    %c0_32 = arith.constant 0 : index
    %c0_33 = arith.constant 0 : index
    %54 = vector.load %arg2[%c6, %c0_32, %c0_33] : memref<9x32x8xbf16, #tpu.memory_space<vmem>>, vector<1x32x8xbf16>
    %55 = vector.shape_cast %54 : vector<1x32x8xbf16> to vector<32x8xbf16>
    %56 = vector.extract_strided_slice %53 {offsets = [0, 9], sizes = [8, 128], strides = [1, 1]} : vector<8x256xbf16> to vector<8x128xbf16>
    %cst_34 = arith.constant dense<0.000000e+00> : vector<32x128xf32>
    %57 = tpu.matmul %55, %56, %cst_34 {dimension_numbers = #tpu.dot_dimension_numbers<[1], [0], [0], [1], [0, 0, 1, 1], [], []>} : vector<32x8xbf16>, vector<8x128xbf16>, vector<32x128xf32> -> vector<32x128xf32>
    %58 = arith.addf %50, %57 : vector<32x128xf32>
    %c1_35 = arith.constant 1 : index
    %c0_36 = arith.constant 0 : index
    %59 = arith.index_cast %1 : i32 to index
    %60 = vector.load %arg1[%c1_35, %c0_36, %59] : memref<4x8x384xbf16, #tpu.memory_space<vmem>>, vector<1x8x256xbf16>
    %61 = vector.shape_cast %60 : vector<1x8x256xbf16> to vector<8x256xbf16>
    %c7 = arith.constant 7 : index
    %c0_37 = arith.constant 0 : index
    %c0_38 = arith.constant 0 : index
    %62 = vector.load %arg2[%c7, %c0_37, %c0_38] : memref<9x32x8xbf16, #tpu.memory_space<vmem>>, vector<1x32x8xbf16>
    %63 = vector.shape_cast %62 : vector<1x32x8xbf16> to vector<32x8xbf16>
    %64 = vector.extract_strided_slice %61 {offsets = [0, 9], sizes = [8, 128], strides = [1, 1]} : vector<8x256xbf16> to vector<8x128xbf16>
    %cst_39 = arith.constant dense<0.000000e+00> : vector<32x128xf32>
    %65 = tpu.matmul %63, %64, %cst_39 {dimension_numbers = #tpu.dot_dimension_numbers<[1], [0], [0], [1], [0, 0, 1, 1], [], []>} : vector<32x8xbf16>, vector<8x128xbf16>, vector<32x128xf32> -> vector<32x128xf32>
    %66 = arith.addf %58, %65 : vector<32x128xf32>
    %c0_40 = arith.constant 0 : index
    %c0_41 = arith.constant 0 : index
    %67 = arith.index_cast %1 : i32 to index
    %68 = vector.load %arg1[%c0_40, %c0_41, %67] : memref<4x8x384xbf16, #tpu.memory_space<vmem>>, vector<1x8x256xbf16>
    %69 = vector.shape_cast %68 : vector<1x8x256xbf16> to vector<8x256xbf16>
    %c8 = arith.constant 8 : index
    %c0_42 = arith.constant 0 : index
    %c0_43 = arith.constant 0 : index
    %70 = vector.load %arg2[%c8, %c0_42, %c0_43] : memref<9x32x8xbf16, #tpu.memory_space<vmem>>, vector<1x32x8xbf16>
    %71 = vector.shape_cast %70 : vector<1x32x8xbf16> to vector<32x8xbf16>
    %72 = vector.extract_strided_slice %69 {offsets = [0, 10], sizes = [8, 128], strides = [1, 1]} : vector<8x256xbf16> to vector<8x128xbf16>
    %cst_44 = arith.constant dense<0.000000e+00> : vector<32x128xf32>
    %73 = tpu.matmul %71, %72, %cst_44 {dimension_numbers = #tpu.dot_dimension_numbers<[1], [0], [0], [1], [0, 0, 1, 1], [], []>} : vector<32x8xbf16>, vector<8x128xbf16>, vector<32x128xf32> -> vector<32x128xf32>
    %74 = arith.addf %66, %73 : vector<32x128xf32>
    %c0_45 = arith.constant 0 : index
    %c0_46 = arith.constant 0 : index
    %75 = vector.load %arg3[%c0_45, %c0_46] : memref<32x1xf32, #tpu.memory_space<vmem>>, vector<32x1xf32>
    %76 = vector.broadcast %75 : vector<32x1xf32> to vector<32x128xf32>
    %77 = arith.mulf %74, %76 : vector<32x128xf32>
    %c0_47 = arith.constant 0 : index
    %c0_48 = arith.constant 0 : index
    %78 = vector.load %arg4[%c0_47, %c0_48] : memref<32x1xf32, #tpu.memory_space<vmem>>, vector<32x1xf32>
    %79 = vector.broadcast %78 : vector<32x1xf32> to vector<32x128xf32>
    %80 = arith.addf %77, %79 : vector<32x128xf32>
    %cst_49 = arith.constant 0.000000e+00 : f32
    %81 = vector.broadcast %cst_49 : f32 to vector<32x128xf32>
    %82 = arith.cmpf ogt, %80, %81 : vector<32x128xf32>
    %cst_50 = arith.constant 2.000000e-01 : f32
    %83 = vector.broadcast %cst_50 : f32 to vector<32x128xf32>
    %84 = arith.mulf %83, %80 : vector<32x128xf32>
    %85 = arith.select %82, %80, %84 : vector<32x128xi1>, vector<32x128xf32>
    %86 = arith.truncf %85 : vector<32x128xf32> to vector<32x128xbf16>
    %c0_51 = arith.constant 0 : index
    %c0_52 = arith.constant 0 : index
    %87 = vector.load %arg5[%c0_51, %c0_52] : memref<32x128xbf16, #tpu.memory_space<vmem>>, vector<32x128xbf16>
    tpu.vector_store %arg5[%c0_51, %c0_52], %86 {strides = array<i32>} : memref<32x128xbf16, #tpu.memory_space<vmem>>, vector<32x128xbf16>,
    return
  }
  func.func @transform_0(%arg0: i32) -> (i32, i32, i32) {
    %c0_i32 = arith.constant 0 : i32
    %c0_i32_0 = arith.constant 0 : i32
    %c0_i32_1 = arith.constant 0 : i32
    %c0_i32_2 = arith.constant 0 : i32
    return %c0_i32, %c0_i32_0, %c0_i32_1 : i32, i32, i32
  }
  func.func @transform_1(%arg0: i32) -> (i32, i32, i32) {
    %c0_i32 = arith.constant 0 : i32
    %c0_i32_0 = arith.constant 0 : i32
    %c0_i32_1 = arith.constant 0 : i32
    %c0_i32_2 = arith.constant 0 : i32
    return %c0_i32, %c0_i32_0, %c0_i32_1 : i32, i32, i32
  }
  func.func @transform_2(%arg0: i32) -> (i32, i32) {
    %c0_i32 = arith.constant 0 : i32
    %c0_i32_0 = arith.constant 0 : i32
    %c0_i32_1 = arith.constant 0 : i32
    return %c0_i32, %c0_i32_0 : i32, i32
  }
  func.func @transform_3(%arg0: i32) -> (i32, i32) {
    %c0_i32 = arith.constant 0 : i32
    %c0_i32_0 = arith.constant 0 : i32
    %c0_i32_1 = arith.constant 0 : i32
    return %c0_i32, %c0_i32_0 : i32, i32
  }
  func.func @transform_4(%arg0: i32) -> (i32, i32) {
    %c0_i32 = arith.constant 0 : i32
    %c0_i32_0 = arith.constant 0 : i32
    return %c0_i32, %arg0 : i32, i32
  }
}

</mosaic_0001>

<llo_original>
// kernel: tpu_custom_call.1
$region0: #{tpu_custom_call.1}
  #allocation0 [shape = 'u32[]', space=smem, size = 0x4, offset = 0x4, fixed_abs, tag = 'smem constant byte address 0x4 - core index']
  #allocation1 [shape = 'u32[144,128]{1,0:T(1,128)}', space=vmem, size = 0x12000, scoped, tag = 'internal scratch']
  %s0 = inlined_call_operand.vmem [shape: bf16[4,8,384], index: 0, kind: input, shape index: {}]
  %s1 = inlined_call_operand.vmem [shape: bf16[9,32,8], index: 1, kind: input, shape index: {}]
  %s2 = inlined_call_operand.vmem [shape: f32[32,1], index: 2, kind: input, shape index: {}]
  %s3 = inlined_call_operand.vmem [shape: f32[32,1], index: 3, kind: input, shape index: {}]
  %s4 = inlined_call_operand.hbm [shape: bf16[32,256], index: 4, kind: output, shape index: {}]
  %s5 = sld [smem:[#allocation0]]
  $region49: #{tpu_custom_call.1} parent=0
    _
  %s7 = ssub.s32 1, %s5
  %s8 = scalar_select 0, %s7, %s5
  $region1: #{tpu_custom_call.1} parent=0
    #allocation2 [shape = 'u8[16384]{0}', space=vmem, size = 0x4000, scoped, tag = 'output window, operand 0']
    #allocation3 [shape = 's32[2]{0}', space=sflag, size = 0x8, scoped, tag = 'scoped memory for tpu_custom_call.1']
    %9 = vsyncpa [#allocation3], 0
    %s10 = scalar_lea.sflag [#allocation3], 1
    %11 = vsyncpa %s10, 0
    loop: start=0, step=1, limit=4
    $region2: #{tpu_custom_call.1} parent=1 // loop_pre_header
      _
    $region3: #{tpu_custom_call.1} parent=1 // loop_header
      %s13 = sphi 0, %s17
      %p14 = scmp.ge.s32.totalorder %s13, 4
      %s21 = sphi 0, %s21
      %s23 = sphi 0, %s21
      %s24 = sphi 0, %s23
      %s38 = sphi 0, %s24
      %s42 = sphi 0, %s42
      %s44 = sphi 0, %s42
      %s45 = sphi 0, %s44
      %s59 = sphi 0, %s45
      %s63 = sphi 0, %s63
      %s65 = sphi 0, %s63
      %s66 = sphi 0, %s65
      %s80 = sphi 0, %s66
      %s84 = sphi 0, %s84
      %s86 = sphi 0, %s84
      %s87 = sphi 0, %s86
      %s101 = sphi 0, %s87
      %s107 = sphi 0, %s109
      %s110 = sphi 0, %s107
      %s111 = sphi 0, %s110
      %s127 = sphi 0, %s111
    $region4: #{tpu_custom_call.1} parent=1 // loop_header_branch
      %16 = sbr.rel (%p14) target = $region8
    $region5: #{tpu_custom_call.1} parent=1 // loop_body
      %s18 = ssub.s32 %s13, 1
      %s19 = ssub.s32 %s13, 2
      %s20 = sadd.s32 %s13, 1
      %s22 = sadd.s32 %s21, 1
      %p25 = scmp.eq.s32.totalorder %s13, 1
      %p26 = scmp.ne.s32.totalorder %s21, %s23
      %p27 = scmp.eq.s32.totalorder %s13, 0
      %p28 = por %p26, %p27
      %p29 = scmp.ne.s32.totalorder %s21, %s23
      %p30 = scmp.eq.s32.totalorder %s18, 1
      %p31 = por %p29, %p30
      %p32 = scmp.ne.s32.totalorder %s23, %s24
      %p33 = scmp.eq.s32.totalorder %s18, 0
      %p34 = por %p32, %p33
      %p35 = scmp.ne.s32.totalorder %s23, %s24
      %p36 = scmp.eq.s32.totalorder %s19, 1
      %p37 = por %p35, %p36
      %p39 = scmp.ne.s32.totalorder %s24, %s38
      %p40 = scmp.eq.s32.totalorder %s19, 0
      %p41 = por %p39, %p40
      %s43 = sadd.s32 %s42, 1
      %p46 = scmp.eq.s32.totalorder %s13, 1
      %p47 = scmp.ne.s32.totalorder %s42, %s44
      %p48 = scmp.eq.s32.totalorder %s13, 0
      %p49 = por %p47, %p48
      %p50 = scmp.ne.s32.totalorder %s42, %s44
      %p51 = scmp.eq.s32.totalorder %s18, 1
      %p52 = por %p50, %p51
      %p53 = scmp.ne.s32.totalorder %s44, %s45
      %p54 = scmp.eq.s32.totalorder %s18, 0
      %p55 = por %p53, %p54
      %p56 = scmp.ne.s32.totalorder %s44, %s45
      %p57 = scmp.eq.s32.totalorder %s19, 1
      %p58 = por %p56, %p57
      %p60 = scmp.ne.s32.totalorder %s45, %s59
      %p61 = scmp.eq.s32.totalorder %s19, 0
      %p62 = por %p60, %p61
      %s64 = sadd.s32 %s63, 1
      %p67 = scmp.eq.s32.totalorder %s13, 1
      %p68 = scmp.ne.s32.totalorder %s63, %s65
      %p69 = scmp.eq.s32.totalorder %s13, 0
      %p70 = por %p68, %p69
      %p71 = scmp.ne.s32.totalorder %s63, %s65
      %p72 = scmp.eq.s32.totalorder %s18, 1
      %p73 = por %p71, %p72
      %p74 = scmp.ne.s32.totalorder %s65, %s66
      %p75 = scmp.eq.s32.totalorder %s18, 0
      %p76 = por %p74, %p75
      %p77 = scmp.ne.s32.totalorder %s65, %s66
      %p78 = scmp.eq.s32.totalorder %s19, 1
      %p79 = por %p77, %p78
      %p81 = scmp.ne.s32.totalorder %s66, %s80
      %p82 = scmp.eq.s32.totalorder %s19, 0
      %p83 = por %p81, %p82
      %s85 = sadd.s32 %s84, 1
      %p88 = scmp.eq.s32.totalorder %s13, 1
      %p89 = scmp.ne.s32.totalorder %s84, %s86
      %p90 = scmp.eq.s32.totalorder %s13, 0
      %p91 = por %p89, %p90
      %p92 = scmp.ne.s32.totalorder %s84, %s86
      %p93 = scmp.eq.s32.totalorder %s18, 1
      %p94 = por %p92, %p93
      %p95 = scmp.ne.s32.totalorder %s86, %s87
      %p96 = scmp.eq.s32.totalorder %s18, 0
      %p97 = por %p95, %p96
      %p98 = scmp.ne.s32.totalorder %s86, %s87
      %p99 = scmp.eq.s32.totalorder %s19, 1
      %p100 = por %p98, %p99
      %p102 = scmp.ne.s32.totalorder %s87, %s101
      %p103 = scmp.eq.s32.totalorder %s19, 0
      %p104 = por %p102, %p103
      %s105 = ssub.s32 %s13, %s20
      %p106 = scmp.eq.s32.totalorder %s105, 0
      %s108 = sadd.s32 %s107, 1
      %s109 = scalar_select %p106, %s107, %s108
      %p112 = pneg %p106
      %p113 = scmp.eq.s32.totalorder %s13, 1
      %p114 = por %p112, %p113
      %p115 = scmp.ne.s32.totalorder %s107, %s110
      %p116 = scmp.eq.s32.totalorder %s13, 0
      %p117 = por %p115, %p116
      %p118 = scmp.ne.s32.totalorder %s107, %s110
      %p119 = scmp.eq.s32.totalorder %s18, 1
      %p120 = por %p118, %p119
      %p121 = scmp.ne.s32.totalorder %s110, %s111
      %p122 = scmp.eq.s32.totalorder %s18, 0
      %p123 = por %p121, %p122
      %p124 = scmp.ne.s32.totalorder %s110, %s111
      %p125 = scmp.eq.s32.totalorder %s19, 1
      %p126 = por %p124, %p125
      %p128 = scmp.ne.s32.totalorder %s111, %s127
      %p129 = scmp.eq.s32.totalorder %s19, 0
      %p130 = por %p128, %p129
      %p131 = scmp.le.s32.totalorder 1, %s13
      %p132 = scmp.lt.s32.totalorder %s13, 3
      %p133 = pnand %p131, %p132
      %p134 = pneg %p133
      // Predicated region
      $region9: #{tpu_custom_call.1} parent=5 // pred_check
        _
      $region10: #{tpu_custom_call.1} parent=5 // pred_check_branch
        %136 = sbr.rel (%p133) target = $region12
      $region11: #{tpu_custom_call.1} parent=5 // pred_region
        %s137 = ssub.s32 %s13, 1
        // Predicated region
        $region13: #{tpu_custom_call.1} parent=11 // pred_check
          %p138 = pneg %p34
        $region14: #{tpu_custom_call.1} parent=11 // pred_check_branch
          %140 = sbr.rel (%p138) target = $region16
        $region15: #{tpu_custom_call.1} parent=11 // pred_region
          _
        $region16: #{tpu_custom_call.1} parent=11 // pred_fallthru
          _
        // Predicated region
        $region17: #{tpu_custom_call.1} parent=11 // pred_check
          %p141 = pneg %p55
        $region18: #{tpu_custom_call.1} parent=11 // pred_check_branch
          %143 = sbr.rel (%p141) target = $region20
        $region19: #{tpu_custom_call.1} parent=11 // pred_region
          _
        $region20: #{tpu_custom_call.1} parent=11 // pred_fallthru
          _
        // Predicated region
        $region21: #{tpu_custom_call.1} parent=11 // pred_check
          %p144 = pneg %p76
        $region22: #{tpu_custom_call.1} parent=11 // pred_check_branch
          %146 = sbr.rel (%p144) target = $region24
        $region23: #{tpu_custom_call.1} parent=11 // pred_region
          _
        $region24: #{tpu_custom_call.1} parent=11 // pred_fallthru
          _
        // Predicated region
        $region25: #{tpu_custom_call.1} parent=11 // pred_check
          %p147 = pneg %p97
        $region26: #{tpu_custom_call.1} parent=11 // pred_check_branch
          %149 = sbr.rel (%p147) target = $region28
        $region27: #{tpu_custom_call.1} parent=11 // pred_region
          _
        $region28: #{tpu_custom_call.1} parent=11 // pred_fallthru
          _
      $region12: #{tpu_custom_call.1} parent=5 // pred_fallthru
        _
      %p150 = scmp.lt.s32.totalorder %s13, 2
      // Predicated region
      $region29: #{tpu_custom_call.1} parent=5 // pred_check
        %p151 = pneg %p150
      $region30: #{tpu_custom_call.1} parent=5 // pred_check_branch
        %153 = sbr.rel (%p151) target = $region32
      $region31: #{tpu_custom_call.1} parent=5 // pred_region
        _
      $region32: #{tpu_custom_call.1} parent=5 // pred_fallthru
        _
      %p154 = scmp.le.s32.totalorder 1, %s13
      %p155 = scmp.lt.s32.totalorder %s13, 3
      %p156 = pnand %p154, %p155
      %p157 = pneg %p156
      // Predicated region
      $region33: #{tpu_custom_call.1} parent=5 // pred_check
        _
      $region34: #{tpu_custom_call.1} parent=5 // pred_check_branch
        %159 = sbr.rel (%p156) target = $region36
      $region35: #{tpu_custom_call.1} parent=5 // pred_region
        %s160 = ssub.s32 %s13, 1
        %p161 = pneg %p34
        %p162 = pneg %p31
        %p163 = pneg %p55
        %p164 = pneg %p52
        %p165 = pneg %p76
        %p166 = pneg %p73
        %p167 = pneg %p97
        %p168 = pneg %p94
        %p169 = pneg %p123
        %p170 = pneg %p120
        %s171 = sand.u32 %s110, 1
        %s172 = scalar_lea.sflag [#allocation3], %s171
        %s173 = sand.u32 %s110, 1
        %s174 = smul.addr %s173, 16
        %s175 = scalar_lea.vmem [#allocation2], %s174
        %s177 = smul.u32 %s18, 128
        %s178 = sshra.s32 %s177, 7
        %s179 = sand.u32 %s177, 127
        %s180 = smul.addr %s178, 4
        %s181 = scalar_lea.vmem %s0, %s180
        %v182 = vld [vmem:[%s181] sm:$0xff]
        %v183 = vld [vmem:[%s1] sm:$0xf]
        %v184 = vld [vmem:[%s1 + $0x4] sm:$0xf]
        %v185 = vld [vmem:[%s1 + $0x8] sm:$0xf]
        %v186 = vld [vmem:[%s1 + $0xc] sm:$0xf]
        %s187 = sadd.s32 %s178, 3
        %s188 = smul.addr %s187, 4
        %s189 = scalar_lea.vmem %s0, %s188
        %v190 = vld [vmem:[%s189] sm:$0xff]
        %s191 = scalar_lea.vmem %s1, 16
        %v192 = vld [vmem:[%s191] sm:$0xf]
        %v193 = vld [vmem:[%s191 + $0x4] sm:$0xf]
        %v194 = vld [vmem:[%s191 + $0x8] sm:$0xf]
        %v195 = vld [vmem:[%s191 + $0xc] sm:$0xf]
        %v200 = vunpack.c.l.b16 %v192
        %v201 = vunpack.c.l.b16 %v193
        %v202 = vunpack.c.l.b16 %v194
        %v203 = vunpack.c.l.b16 %v195
        %v204 = vpack.c.b16 %v201, %v200
        %v205 = vpack.c.b16 %v203, %v202
        %vm206 = vcmask 64512
        %v208 = vsel %vm206, %v204, 0
        %v211 = vsel %vm206, %v205, 0
        %vm213 = vcmask 1043456
        %v215 = vsel %vm213, %v190, 0
        %217 = vmatprep.subr.bf16.mxu0 0
        %218 = vmatpush1.bf16.msra.mxu0 0
        %219 = vmatprep.subr.bf16.mxu0 0
        %220 = vmatpush1.bf16.msra.mxu0 0
        %221 = vmatprep.subr.bf16.mxu0 0
        %222 = vmatpush1.bf16.msra.mxu0 0
        %223 = vmatprep.subr.bf16.mxu0 0
        %224 = vmatpush1.bf16.msra.mxu0 0
        %225 = vmatprep.subr.bf16.mxu0 0
        %226 = vmatpush1.bf16.msra.mxu0 0
        %227 = vmatprep.subr.bf16.mxu0 0
        %228 = vmatpush1.bf16.msra.mxu0 0
        %229 = vmatprep.subr.bf16.mxu0 0
        %230 = vmatpush1.bf16.msra.mxu0 0
        %231 = vmatprep.subr.bf16.mxu0 0
        %232 = vmatpush1.bf16.msra.mxu0 %v215
        %233 = vmatprep.subr.bf16.mxu0 0
        %234 = vmatpush2.bf16.msra.mxu0 0
        %235 = vmatprep.subr.bf16.mxu0 0
        %236 = vmatpush2.bf16.msra.mxu0 0
        %237 = vmatprep.subr.bf16.mxu0 0
        %238 = vmatpush2.bf16.msra.mxu0 0
        %239 = vmatprep.subr.bf16.mxu0 0
        %240 = vmatpush2.bf16.msra.mxu0 0
        %241 = vmatprep.subr.bf16.mxu0 0
        %242 = vmatpush2.bf16.msra.mxu0 0
        %243 = vmatprep.subr.bf16.mxu0 0
        %244 = vmatpush2.bf16.msra.mxu0 0
        %245 = vmatprep.subr.bf16.mxu0 0
        %246 = vmatpush2.bf16.msra.mxu0 0
        %247 = vmatprep.subr.bf16.mxu0 0
        %248 = vmatpush2.bf16.msra.mxu0 0
        %249 = vmatprep.mubr.bf16.mxu0 0
        %250 = vmatmul.mubr.bf16.gmra.mxu0 %v208
        %v251 = vpop.f32.mrf.mxu0
        %v252 = vadd.f32 0.0, %v251
        %v253 = vpop.f32.mrf.mxu0
        %v254 = vpop.f32.mrf.mxu0
        %v255 = vadd.f32 0.0, %v254
        %v256 = vpop.f32.mrf.mxu0
        %257 = vmatprep.mubr.bf16.mxu0 0
        %258 = vmatmul.mubr.bf16.gmra.mxu0 %v211
        %v259 = vpop.f32.mrf.mxu0
        %v260 = vadd.f32 0.0, %v259
        %v261 = vpop.f32.mrf.mxu0
        %v262 = vpop.f32.mrf.mxu0
        %v263 = vadd.f32 0.0, %v262
        %v264 = vpop.f32.mrf.mxu0
        %265 = vdwg.mxu0
        %v270 = vunpack.c.l.b16 %v183
        %v271 = vunpack.c.l.b16 %v184
        %v272 = vunpack.c.l.b16 %v185
        %v273 = vunpack.c.l.b16 %v186
        %v274 = vpack.c.b16 %v271, %v270
        %v275 = vpack.c.b16 %v273, %v272
        %v277 = vsel %vm206, %v274, 0
        %v280 = vsel %vm206, %v275, 0
        %v283 = vsel %vm213, %v182, 0
        %285 = vmatprep.subr.bf16.mxu0 0
        %286 = vmatpush1.bf16.msra.mxu0 0
        %287 = vmatprep.subr.bf16.mxu0 0
        %288 = vmatpush1.bf16.msra.mxu0 0
        %289 = vmatprep.subr.bf16.mxu0 0
        %290 = vmatpush1.bf16.msra.mxu0 0
        %291 = vmatprep.subr.bf16.mxu0 0
        %292 = vmatpush1.bf16.msra.mxu0 0
        %293 = vmatprep.subr.bf16.mxu0 0
        %294 = vmatpush1.bf16.msra.mxu0 0
        %295 = vmatprep.subr.bf16.mxu0 0
        %296 = vmatpush1.bf16.msra.mxu0 0
        %297 = vmatprep.subr.bf16.mxu0 0
        %298 = vmatpush1.bf16.msra.mxu0 0
        %299 = vmatprep.subr.bf16.mxu0 0
        %300 = vmatpush1.bf16.msra.mxu0 %v283
        %301 = vmatprep.subr.bf16.mxu0 0
        %302 = vmatpush2.bf16.msra.mxu0 0
        %303 = vmatprep.subr.bf16.mxu0 0
        %304 = vmatpush2.bf16.msra.mxu0 0
        %305 = vmatprep.subr.bf16.mxu0 0
        %306 = vmatpush2.bf16.msra.mxu0 0
        %307 = vmatprep.subr.bf16.mxu0 0
        %308 = vmatpush2.bf16.msra.mxu0 0
        %309 = vmatprep.subr.bf16.mxu0 0
        %310 = vmatpush2.bf16.msra.mxu0 0
        %311 = vmatprep.subr.bf16.mxu0 0
        %312 = vmatpush2.bf16.msra.mxu0 0
        %313 = vmatprep.subr.bf16.mxu0 0
        %314 = vmatpush2.bf16.msra.mxu0 0
        %315 = vmatprep.subr.bf16.mxu0 0
        %316 = vmatpush2.bf16.msra.mxu0 0
        %317 = vmatprep.mubr.bf16.mxu0 0
        %318 = vmatmul.mubr.bf16.gmra.mxu0 %v277
        %v319 = vpop.f32.mrf.mxu0
        %v320 = vadd.f32 %v252, %v319
        %v321 = vpop.f32.mrf.mxu0
        %v322 = vpop.f32.mrf.mxu0
        %v323 = vadd.f32 %v255, %v322
        %v324 = vpop.f32.mrf.mxu0
        %325 = vmatprep.mubr.bf16.mxu0 0
        %326 = vmatmul.mubr.bf16.gmra.mxu0 %v280
        %v327 = vpop.f32.mrf.mxu0
        %v328 = vadd.f32 %v260, %v327
        %v329 = vpop.f32.mrf.mxu0
        %v330 = vpop.f32.mrf.mxu0
        %v331 = vadd.f32 %v263, %v330
        %v332 = vpop.f32.mrf.mxu0
        %333 = vdwg.mxu0
        %s334 = scalar_lea.vmem %s1, 32
        %v335 = vld [vmem:[%s334] sm:$0xf]
        %v336 = vld [vmem:[%s334 + $0x4] sm:$0xf]
        %v337 = vld [vmem:[%s334 + $0x8] sm:$0xf]
        %v338 = vld [vmem:[%s334 + $0xc] sm:$0xf]
        %v343 = vunpack.c.l.b16 %v335
        %v344 = vunpack.c.l.b16 %v336
        %v345 = vunpack.c.l.b16 %v337
        %v346 = vunpack.c.l.b16 %v338
        %v347 = vpack.c.b16 %v344, %v343
        %v348 = vpack.c.b16 %v346, %v345
        %v350 = vunpack.c.l.b16 %v182
        %v351 = vunpack.c.h.b16 %v182
        %v352 = vpack.c.b16 %v350, %v350
        %v353 = vpack.c.b16 %v351, %v351
        %354 = vrot.lane.b32.xlu0 %v352, 127
        %v355 = vpop.permute.xlu0 %354
        %356 = vrot.lane.b32.xlu0 %v353, 127
        %v357 = vpop.permute.xlu0 %356
        %vm358 = vcmask 1039360
        %v359 = vsel %vm358, %v355, %v357
        %v361 = vsel %vm206, %v347, 0
        %v364 = vsel %vm206, %v348, 0
        %v367 = vsel %vm213, %v359, 0
        %369 = vmatprep.subr.bf16.mxu0 0
        %370 = vmatpush1.bf16.msra.mxu0 0
        %371 = vmatprep.subr.bf16.mxu0 0
        %372 = vmatpush1.bf16.msra.mxu0 0
        %373 = vmatprep.subr.bf16.mxu0 0
        %374 = vmatpush1.bf16.msra.mxu0 0
        %375 = vmatprep.subr.bf16.mxu0 0
        %376 = vmatpush1.bf16.msra.mxu0 0
        %377 = vmatprep.subr.bf16.mxu0 0
        %378 = vmatpush1.bf16.msra.mxu0 0
        %379 = vmatprep.subr.bf16.mxu0 0
        %380 = vmatpush1.bf16.msra.mxu0 0
        %381 = vmatprep.subr.bf16.mxu0 0
        %382 = vmatpush1.bf16.msra.mxu0 0
        %383 = vmatprep.subr.bf16.mxu0 0
        %384 = vmatpush1.bf16.msra.mxu0 %v367
        %385 = vmatprep.subr.bf16.mxu0 0
        %386 = vmatpush2.bf16.msra.mxu0 0
        %387 = vmatprep.subr.bf16.mxu0 0
        %388 = vmatpush2.bf16.msra.mxu0 0
        %389 = vmatprep.subr.bf16.mxu0 0
        %390 = vmatpush2.bf16.msra.mxu0 0
        %391 = vmatprep.subr.bf16.mxu0 0
        %392 = vmatpush2.bf16.msra.mxu0 0
        %393 = vmatprep.subr.bf16.mxu0 0
        %394 = vmatpush2.bf16.msra.mxu0 0
        %395 = vmatprep.subr.bf16.mxu0 0
        %396 = vmatpush2.bf16.msra.mxu0 0
        %397 = vmatprep.subr.bf16.mxu0 0
        %398 = vmatpush2.bf16.msra.mxu0 0
        %399 = vmatprep.subr.bf16.mxu0 0
        %400 = vmatpush2.bf16.msra.mxu0 0
        %401 = vmatprep.mubr.bf16.mxu0 0
        %402 = vmatmul.mubr.bf16.gmra.mxu0 %v361
        %v403 = vpop.f32.mrf.mxu0
        %v404 = vadd.f32 0.0, %v403
        %v405 = vpop.f32.mrf.mxu0
        %v406 = vpop.f32.mrf.mxu0
        %v407 = vadd.f32 0.0, %v406
        %v408 = vpop.f32.mrf.mxu0
        %409 = vmatprep.mubr.bf16.mxu0 0
        %410 = vmatmul.mubr.bf16.gmra.mxu0 %v364
        %v411 = vpop.f32.mrf.mxu0
        %v412 = vadd.f32 0.0, %v411
        %v413 = vpop.f32.mrf.mxu0
        %v414 = vpop.f32.mrf.mxu0
        %v415 = vadd.f32 0.0, %v414
        %v416 = vpop.f32.mrf.mxu0
        %417 = vdwg.mxu0
        %v418 = vadd.f32 %v320, %v404
        %v419 = vadd.f32 %v323, %v407
        %v420 = vadd.f32 %v328, %v412
        %v421 = vadd.f32 %v331, %v415
        %s422 = sadd.s32 %s178, 6
        %s423 = smul.addr %s422, 4
        %s424 = scalar_lea.vmem %s0, %s423
        %v425 = vld [vmem:[%s424] sm:$0xff]
        %s426 = scalar_lea.vmem %s1, 48
        %v427 = vld [vmem:[%s426] sm:$0xf]
        %v428 = vld [vmem:[%s426 + $0x4] sm:$0xf]
        %v429 = vld [vmem:[%s426 + $0x8] sm:$0xf]
        %v430 = vld [vmem:[%s426 + $0xc] sm:$0xf]
        %v435 = vunpack.c.l.b16 %v427
        %v436 = vunpack.c.l.b16 %v428
        %v437 = vunpack.c.l.b16 %v429
        %v438 = vunpack.c.l.b16 %v430
        %v439 = vpack.c.b16 %v436, %v435
        %v440 = vpack.c.b16 %v438, %v437
        %v442 = vsel %vm206, %v439, 0
        %v445 = vsel %vm206, %v440, 0
        %v448 = vsel %vm213, %v425, 0
        %450 = vmatprep.subr.bf16.mxu0 0
        %451 = vmatpush1.bf16.msra.mxu0 0
        %452 = vmatprep.subr.bf16.mxu0 0
        %453 = vmatpush1.bf16.msra.mxu0 0
        %454 = vmatprep.subr.bf16.mxu0 0
        %455 = vmatpush1.bf16.msra.mxu0 0
        %456 = vmatprep.subr.bf16.mxu0 0
        %457 = vmatpush1.bf16.msra.mxu0 0
        %458 = vmatprep.subr.bf16.mxu0 0
        %459 = vmatpush1.bf16.msra.mxu0 0
        %460 = vmatprep.subr.bf16.mxu0 0
        %461 = vmatpush1.bf16.msra.mxu0 0
        %462 = vmatprep.subr.bf16.mxu0 0
        %463 = vmatpush1.bf16.msra.mxu0 0
        %464 = vmatprep.subr.bf16.mxu0 0
        %465 = vmatpush1.bf16.msra.mxu0 %v448
        %466 = vmatprep.subr.bf16.mxu0 0
        %467 = vmatpush2.bf16.msra.mxu0 0
        %468 = vmatprep.subr.bf16.mxu0 0
        %469 = vmatpush2.bf16.msra.mxu0 0
        %470 = vmatprep.subr.bf16.mxu0 0
        %471 = vmatpush2.bf16.msra.mxu0 0
        %472 = vmatprep.subr.bf16.mxu0 0
        %473 = vmatpush2.bf16.msra.mxu0 0
        %474 = vmatprep.subr.bf16.mxu0 0
        %475 = vmatpush2.bf16.msra.mxu0 0
        %476 = vmatprep.subr.bf16.mxu0 0
        %477 = vmatpush2.bf16.msra.mxu0 0
        %478 = vmatprep.subr.bf16.mxu0 0
        %479 = vmatpush2.bf16.msra.mxu0 0
        %480 = vmatprep.subr.bf16.mxu0 0
        %481 = vmatpush2.bf16.msra.mxu0 0
        %482 = vmatprep.mubr.bf16.mxu0 0
        %483 = vmatmul.mubr.bf16.gmra.mxu0 %v442
        %v484 = vpop.f32.mrf.mxu0
        %v485 = vadd.f32 0.0, %v484
        %v486 = vpop.f32.mrf.mxu0
        %v487 = vpop.f32.mrf.mxu0
        %v488 = vadd.f32 0.0, %v487
        %v489 = vpop.f32.mrf.mxu0
        %490 = vmatprep.mubr.bf16.mxu0 0
        %491 = vmatmul.mubr.bf16.gmra.mxu0 %v445
        %v492 = vpop.f32.mrf.mxu0
        %v493 = vadd.f32 0.0, %v492
        %v494 = vpop.f32.mrf.mxu0
        %v495 = vpop.f32.mrf.mxu0
        %v496 = vadd.f32 0.0, %v495
        %v497 = vpop.f32.mrf.mxu0
        %498 = vdwg.mxu0
        %v499 = vadd.f32 %v418, %v485
        %v500 = vadd.f32 %v419, %v488
        %v501 = vadd.f32 %v420, %v493
        %v502 = vadd.f32 %v421, %v496
        %s503 = sadd.s32 %s178, 9
        %s504 = smul.addr %s503, 4
        %s505 = scalar_lea.vmem %s0, %s504
        %v506 = vld [vmem:[%s505] sm:$0xff]
        %s507 = scalar_lea.vmem %s1, 64
        %v508 = vld [vmem:[%s507] sm:$0xf]
        %v509 = vld [vmem:[%s507 + $0x4] sm:$0xf]
        %v510 = vld [vmem:[%s507 + $0x8] sm:$0xf]
        %v511 = vld [vmem:[%s507 + $0xc] sm:$0xf]
        %v516 = vunpack.c.l.b16 %v508
        %v517 = vunpack.c.l.b16 %v509
        %v518 = vunpack.c.l.b16 %v510
        %v519 = vunpack.c.l.b16 %v511
        %v520 = vpack.c.b16 %v517, %v516
        %v521 = vpack.c.b16 %v519, %v518
        %v523 = vsel %vm206, %v520, 0
        %v526 = vsel %vm206, %v521, 0
        %v529 = vsel %vm213, %v506, 0
        %531 = vmatprep.subr.bf16.mxu0 0
        %532 = vmatpush1.bf16.msra.mxu0 0
        %533 = vmatprep.subr.bf16.mxu0 0
        %534 = vmatpush1.bf16.msra.mxu0 0
        %535 = vmatprep.subr.bf16.mxu0 0
        %536 = vmatpush1.bf16.msra.mxu0 0
        %537 = vmatprep.subr.bf16.mxu0 0
        %538 = vmatpush1.bf16.msra.mxu0 0
        %539 = vmatprep.subr.bf16.mxu0 0
        %540 = vmatpush1.bf16.msra.mxu0 0
        %541 = vmatprep.subr.bf16.mxu0 0
        %542 = vmatpush1.bf16.msra.mxu0 0
        %543 = vmatprep.subr.bf16.mxu0 0
        %544 = vmatpush1.bf16.msra.mxu0 0
        %545 = vmatprep.subr.bf16.mxu0 0
        %546 = vmatpush1.bf16.msra.mxu0 %v529
        %547 = vmatprep.subr.bf16.mxu0 0
        %548 = vmatpush2.bf16.msra.mxu0 0
        %549 = vmatprep.subr.bf16.mxu0 0
        %550 = vmatpush2.bf16.msra.mxu0 0
        %551 = vmatprep.subr.bf16.mxu0 0
        %552 = vmatpush2.bf16.msra.mxu0 0
        %553 = vmatprep.subr.bf16.mxu0 0
        %554 = vmatpush2.bf16.msra.mxu0 0
        %555 = vmatprep.subr.bf16.mxu0 0
        %556 = vmatpush2.bf16.msra.mxu0 0
        %557 = vmatprep.subr.bf16.mxu0 0
        %558 = vmatpush2.bf16.msra.mxu0 0
        %559 = vmatprep.subr.bf16.mxu0 0
        %560 = vmatpush2.bf16.msra.mxu0 0
        %561 = vmatprep.subr.bf16.mxu0 0
        %562 = vmatpush2.bf16.msra.mxu0 0
        %563 = vmatprep.mubr.bf16.mxu0 0
        %564 = vmatmul.mubr.bf16.gmra.mxu0 %v523
        %v565 = vpop.f32.mrf.mxu0
        %v566 = vadd.f32 0.0, %v565
        %v567 = vpop.f32.mrf.mxu0
        %v568 = vpop.f32.mrf.mxu0
        %v569 = vadd.f32 0.0, %v568
        %v570 = vpop.f32.mrf.mxu0
        %571 = vmatprep.mubr.bf16.mxu0 0
        %572 = vmatmul.mubr.bf16.gmra.mxu0 %v526
        %v573 = vpop.f32.mrf.mxu0
        %v574 = vadd.f32 0.0, %v573
        %v575 = vpop.f32.mrf.mxu0
        %v576 = vpop.f32.mrf.mxu0
        %v577 = vadd.f32 0.0, %v576
        %v578 = vpop.f32.mrf.mxu0
        %579 = vdwg.mxu0
        %v580 = vadd.f32 %v499, %v566
        %v581 = vadd.f32 %v500, %v569
        %v582 = vadd.f32 %v501, %v574
        %v583 = vadd.f32 %v502, %v577
        %s584 = scalar_lea.vmem %s1, 80
        %v585 = vld [vmem:[%s584] sm:$0xf]
        %v586 = vld [vmem:[%s584 + $0x4] sm:$0xf]
        %v587 = vld [vmem:[%s584 + $0x8] sm:$0xf]
        %v588 = vld [vmem:[%s584 + $0xc] sm:$0xf]
        %v593 = vunpack.c.l.b16 %v585
        %v594 = vunpack.c.l.b16 %v586
        %v595 = vunpack.c.l.b16 %v587
        %v596 = vunpack.c.l.b16 %v588
        %v597 = vpack.c.b16 %v594, %v593
        %v598 = vpack.c.b16 %v596, %v595
        %v600 = vunpack.c.l.b16 %v425
        %v601 = vunpack.c.h.b16 %v425
        %v602 = vpack.c.b16 %v600, %v600
        %v603 = vpack.c.b16 %v601, %v601
        %604 = vrot.lane.b32.xlu0 %v602, 127
        %v605 = vpop.permute.xlu0 %604
        %606 = vrot.lane.b32.xlu0 %v603, 127
        %v607 = vpop.permute.xlu0 %606
        %v608 = vsel %vm358, %v605, %v607
        %v610 = vsel %vm206, %v597, 0
        %v613 = vsel %vm206, %v598, 0
        %v616 = vsel %vm213, %v608, 0
        %618 = vmatprep.subr.bf16.mxu0 0
        %619 = vmatpush1.bf16.msra.mxu0 0
        %620 = vmatprep.subr.bf16.mxu0 0
        %621 = vmatpush1.bf16.msra.mxu0 0
        %622 = vmatprep.subr.bf16.mxu0 0
        %623 = vmatpush1.bf16.msra.mxu0 0
        %624 = vmatprep.subr.bf16.mxu0 0
        %625 = vmatpush1.bf16.msra.mxu0 0
        %626 = vmatprep.subr.bf16.mxu0 0
        %627 = vmatpush1.bf16.msra.mxu0 0
        %628 = vmatprep.subr.bf16.mxu0 0
        %629 = vmatpush1.bf16.msra.mxu0 0
        %630 = vmatprep.subr.bf16.mxu0 0
        %631 = vmatpush1.bf16.msra.mxu0 0
        %632 = vmatprep.subr.bf16.mxu0 0
        %633 = vmatpush1.bf16.msra.mxu0 %v616
        %634 = vmatprep.subr.bf16.mxu0 0
        %635 = vmatpush2.bf16.msra.mxu0 0
        %636 = vmatprep.subr.bf16.mxu0 0
        %637 = vmatpush2.bf16.msra.mxu0 0
        %638 = vmatprep.subr.bf16.mxu0 0
        %639 = vmatpush2.bf16.msra.mxu0 0
        %640 = vmatprep.subr.bf16.mxu0 0
        %641 = vmatpush2.bf16.msra.mxu0 0
        %642 = vmatprep.subr.bf16.mxu0 0
        %643 = vmatpush2.bf16.msra.mxu0 0
        %644 = vmatprep.subr.bf16.mxu0 0
        %645 = vmatpush2.bf16.msra.mxu0 0
        %646 = vmatprep.subr.bf16.mxu0 0
        %647 = vmatpush2.bf16.msra.mxu0 0
        %648 = vmatprep.subr.bf16.mxu0 0
        %649 = vmatpush2.bf16.msra.mxu0 0
        %650 = vmatprep.mubr.bf16.mxu0 0
        %651 = vmatmul.mubr.bf16.gmra.mxu0 %v610
        %v652 = vpop.f32.mrf.mxu0
        %v653 = vadd.f32 0.0, %v652
        %v654 = vpop.f32.mrf.mxu0
        %v655 = vpop.f32.mrf.mxu0
        %v656 = vadd.f32 0.0, %v655
        %v657 = vpop.f32.mrf.mxu0
        %658 = vmatprep.mubr.bf16.mxu0 0
        %659 = vmatmul.mubr.bf16.gmra.mxu0 %v613
        %v660 = vpop.f32.mrf.mxu0
        %v661 = vadd.f32 0.0, %v660
        %v662 = vpop.f32.mrf.mxu0
        %v663 = vpop.f32.mrf.mxu0
        %v664 = vadd.f32 0.0, %v663
        %v665 = vpop.f32.mrf.mxu0
        %666 = vdwg.mxu0
        %v667 = vadd.f32 %v580, %v653
        %v668 = vadd.f32 %v581, %v656
        %v669 = vadd.f32 %v582, %v661
        %v670 = vadd.f32 %v583, %v664
        %s671 = scalar_lea.vmem %s1, 96
        %v672 = vld [vmem:[%s671] sm:$0xf]
        %v673 = vld [vmem:[%s671 + $0x4] sm:$0xf]
        %v674 = vld [vmem:[%s671 + $0x8] sm:$0xf]
        %v675 = vld [vmem:[%s671 + $0xc] sm:$0xf]
        %v680 = vunpack.c.l.b16 %v672
        %v681 = vunpack.c.l.b16 %v673
        %v682 = vunpack.c.l.b16 %v674
        %v683 = vunpack.c.l.b16 %v675
        %v684 = vpack.c.b16 %v681, %v680
        %v685 = vpack.c.b16 %v683, %v682
        %686 = vrot.lane.b32.xlu0 %v352, 119
        %v687 = vpop.permute.xlu0 %686
        %688 = vrot.lane.b32.xlu0 %v353, 119
        %v689 = vpop.permute.xlu0 %688
        %vm690 = vcmask 973824
        %v691 = vsel %vm690, %v687, %v689
        %v693 = vsel %vm206, %v684, 0
        %v696 = vsel %vm206, %v685, 0
        %v699 = vsel %vm213, %v691, 0
        %701 = vmatprep.subr.bf16.mxu0 0
        %702 = vmatpush1.bf16.msra.mxu0 0
        %703 = vmatprep.subr.bf16.mxu0 0
        %704 = vmatpush1.bf16.msra.mxu0 0
        %705 = vmatprep.subr.bf16.mxu0 0
        %706 = vmatpush1.bf16.msra.mxu0 0
        %707 = vmatprep.subr.bf16.mxu0 0
        %708 = vmatpush1.bf16.msra.mxu0 0
        %709 = vmatprep.subr.bf16.mxu0 0
        %710 = vmatpush1.bf16.msra.mxu0 0
        %711 = vmatprep.subr.bf16.mxu0 0
        %712 = vmatpush1.bf16.msra.mxu0 0
        %713 = vmatprep.subr.bf16.mxu0 0
        %714 = vmatpush1.bf16.msra.mxu0 0
        %715 = vmatprep.subr.bf16.mxu0 0
        %716 = vmatpush1.bf16.msra.mxu0 %v699
        %717 = vmatprep.subr.bf16.mxu0 0
        %718 = vmatpush2.bf16.msra.mxu0 0
        %719 = vmatprep.subr.bf16.mxu0 0
        %720 = vmatpush2.bf16.msra.mxu0 0
        %721 = vmatprep.subr.bf16.mxu0 0
        %722 = vmatpush2.bf16.msra.mxu0 0
        %723 = vmatprep.subr.bf16.mxu0 0
        %724 = vmatpush2.bf16.msra.mxu0 0
        %725 = vmatprep.subr.bf16.mxu0 0
        %726 = vmatpush2.bf16.msra.mxu0 0
        %727 = vmatprep.subr.bf16.mxu0 0
        %728 = vmatpush2.bf16.msra.mxu0 0
        %729 = vmatprep.subr.bf16.mxu0 0
        %730 = vmatpush2.bf16.msra.mxu0 0
        %731 = vmatprep.subr.bf16.mxu0 0
        %732 = vmatpush2.bf16.msra.mxu0 0
        %733 = vmatprep.mubr.bf16.mxu0 0
        %734 = vmatmul.mubr.bf16.gmra.mxu0 %v693
        %v735 = vpop.f32.mrf.mxu0
        %v736 = vadd.f32 0.0, %v735
        %v737 = vpop.f32.mrf.mxu0
        %v738 = vpop.f32.mrf.mxu0
        %v739 = vadd.f32 0.0, %v738
        %v740 = vpop.f32.mrf.mxu0
        %741 = vmatprep.mubr.bf16.mxu0 0
        %742 = vmatmul.mubr.bf16.gmra.mxu0 %v696
        %v743 = vpop.f32.mrf.mxu0
        %v744 = vadd.f32 0.0, %v743
        %v745 = vpop.f32.mrf.mxu0
        %v746 = vpop.f32.mrf.mxu0
        %v747 = vadd.f32 0.0, %v746
        %v748 = vpop.f32.mrf.mxu0
        %749 = vdwg.mxu0
        %v750 = vadd.f32 %v667, %v736
        %v751 = vadd.f32 %v668, %v739
        %v752 = vadd.f32 %v669, %v744
        %v753 = vadd.f32 %v670, %v747
        %s754 = scalar_lea.vmem %s1, 112
        %v755 = vld [vmem:[%s754] sm:$0xf]
        %v756 = vld [vmem:[%s754 + $0x4] sm:$0xf]
        %v757 = vld [vmem:[%s754 + $0x8] sm:$0xf]
        %v758 = vld [vmem:[%s754 + $0xc] sm:$0xf]
        %v763 = vunpack.c.l.b16 %v755
        %v764 = vunpack.c.l.b16 %v756
        %v765 = vunpack.c.l.b16 %v757
        %v766 = vunpack.c.l.b16 %v758
        %v767 = vpack.c.b16 %v764, %v763
        %v768 = vpack.c.b16 %v766, %v765
        %v770 = vunpack.c.l.b16 %v190
        %v771 = vunpack.c.h.b16 %v190
        %v772 = vpack.c.b16 %v770, %v770
        %v773 = vpack.c.b16 %v771, %v771
        %774 = vrot.lane.b32.xlu0 %v772, 119
        %v775 = vpop.permute.xlu0 %774
        %776 = vrot.lane.b32.xlu0 %v773, 119
        %v777 = vpop.permute.xlu0 %776
        %v778 = vsel %vm690, %v775, %v777
        %v780 = vsel %vm206, %v767, 0
        %v783 = vsel %vm206, %v768, 0
        %v786 = vsel %vm213, %v778, 0
        %788 = vmatprep.subr.bf16.mxu0 0
        %789 = vmatpush1.bf16.msra.mxu0 0
        %790 = vmatprep.subr.bf16.mxu0 0
        %791 = vmatpush1.bf16.msra.mxu0 0
        %792 = vmatprep.subr.bf16.mxu0 0
        %793 = vmatpush1.bf16.msra.mxu0 0
        %794 = vmatprep.subr.bf16.mxu0 0
        %795 = vmatpush1.bf16.msra.mxu0 0
        %796 = vmatprep.subr.bf16.mxu0 0
        %797 = vmatpush1.bf16.msra.mxu0 0
        %798 = vmatprep.subr.bf16.mxu0 0
        %799 = vmatpush1.bf16.msra.mxu0 0
        %800 = vmatprep.subr.bf16.mxu0 0
        %801 = vmatpush1.bf16.msra.mxu0 0
        %802 = vmatprep.subr.bf16.mxu0 0
        %803 = vmatpush1.bf16.msra.mxu0 %v786
        %804 = vmatprep.subr.bf16.mxu0 0
        %805 = vmatpush2.bf16.msra.mxu0 0
        %806 = vmatprep.subr.bf16.mxu0 0
        %807 = vmatpush2.bf16.msra.mxu0 0
        %808 = vmatprep.subr.bf16.mxu0 0
        %809 = vmatpush2.bf16.msra.mxu0 0
        %810 = vmatprep.subr.bf16.mxu0 0
        %811 = vmatpush2.bf16.msra.mxu0 0
        %812 = vmatprep.subr.bf16.mxu0 0
        %813 = vmatpush2.bf16.msra.mxu0 0
        %814 = vmatprep.subr.bf16.mxu0 0
        %815 = vmatpush2.bf16.msra.mxu0 0
        %816 = vmatprep.subr.bf16.mxu0 0
        %817 = vmatpush2.bf16.msra.mxu0 0
        %818 = vmatprep.subr.bf16.mxu0 0
        %819 = vmatpush2.bf16.msra.mxu0 0
        %820 = vmatprep.mubr.bf16.mxu0 0
        %821 = vmatmul.mubr.bf16.gmra.mxu0 %v780
        %v822 = vpop.f32.mrf.mxu0
        %v823 = vadd.f32 0.0, %v822
        %v824 = vpop.f32.mrf.mxu0
        %v825 = vpop.f32.mrf.mxu0
        %v826 = vadd.f32 0.0, %v825
        %v827 = vpop.f32.mrf.mxu0
        %828 = vmatprep.mubr.bf16.mxu0 0
        %829 = vmatmul.mubr.bf16.gmra.mxu0 %v783
        %v830 = vpop.f32.mrf.mxu0
        %v831 = vadd.f32 0.0, %v830
        %v832 = vpop.f32.mrf.mxu0
        %v833 = vpop.f32.mrf.mxu0
        %v834 = vadd.f32 0.0, %v833
        %v835 = vpop.f32.mrf.mxu0
        %836 = vdwg.mxu0
        %v837 = vadd.f32 %v750, %v823
        %v838 = vadd.f32 %v751, %v826
        %v839 = vadd.f32 %v752, %v831
        %v840 = vadd.f32 %v753, %v834
        %s841 = scalar_lea.vmem %s1, 128
        %v842 = vld [vmem:[%s841] sm:$0xf]
        %v843 = vld [vmem:[%s841 + $0x4] sm:$0xf]
        %v844 = vld [vmem:[%s841 + $0x8] sm:$0xf]
        %v845 = vld [vmem:[%s841 + $0xc] sm:$0xf]
        %v850 = vunpack.c.l.b16 %v842
        %v851 = vunpack.c.l.b16 %v843
        %v852 = vunpack.c.l.b16 %v844
        %v853 = vunpack.c.l.b16 %v845
        %v854 = vpack.c.b16 %v851, %v850
        %v855 = vpack.c.b16 %v853, %v852
        %856 = vrot.lane.b32.xlu0 %v352, 118
        %v857 = vpop.permute.xlu0 %856
        %858 = vrot.lane.b32.xlu0 %v353, 118
        %v859 = vpop.permute.xlu0 %858
        %vm860 = vcmask 965632
        %v861 = vsel %vm860, %v857, %v859
        %v863 = vsel %vm206, %v854, 0
        %v866 = vsel %vm206, %v855, 0
        %v869 = vsel %vm213, %v861, 0
        %871 = vmatprep.subr.bf16.mxu0 0
        %872 = vmatpush1.bf16.msra.mxu0 0
        %873 = vmatprep.subr.bf16.mxu0 0
        %874 = vmatpush1.bf16.msra.mxu0 0
        %875 = vmatprep.subr.bf16.mxu0 0
        %876 = vmatpush1.bf16.msra.mxu0 0
        %877 = vmatprep.subr.bf16.mxu0 0
        %878 = vmatpush1.bf16.msra.mxu0 0
        %879 = vmatprep.subr.bf16.mxu0 0
        %880 = vmatpush1.bf16.msra.mxu0 0
        %881 = vmatprep.subr.bf16.mxu0 0
        %882 = vmatpush1.bf16.msra.mxu0 0
        %883 = vmatprep.subr.bf16.mxu0 0
        %884 = vmatpush1.bf16.msra.mxu0 0
        %885 = vmatprep.subr.bf16.mxu0 0
        %886 = vmatpush1.bf16.msra.mxu0 %v869
        %887 = vmatprep.subr.bf16.mxu0 0
        %888 = vmatpush2.bf16.msra.mxu0 0
        %889 = vmatprep.subr.bf16.mxu0 0
        %890 = vmatpush2.bf16.msra.mxu0 0
        %891 = vmatprep.subr.bf16.mxu0 0
        %892 = vmatpush2.bf16.msra.mxu0 0
        %893 = vmatprep.subr.bf16.mxu0 0
        %894 = vmatpush2.bf16.msra.mxu0 0
        %895 = vmatprep.subr.bf16.mxu0 0
        %896 = vmatpush2.bf16.msra.mxu0 0
        %897 = vmatprep.subr.bf16.mxu0 0
        %898 = vmatpush2.bf16.msra.mxu0 0
        %899 = vmatprep.subr.bf16.mxu0 0
        %900 = vmatpush2.bf16.msra.mxu0 0
        %901 = vmatprep.subr.bf16.mxu0 0
        %902 = vmatpush2.bf16.msra.mxu0 0
        %903 = vmatprep.mubr.bf16.mxu0 0
        %904 = vmatmul.mubr.bf16.gmra.mxu0 %v863
        %v905 = vpop.f32.mrf.mxu0
        %v906 = vadd.f32 0.0, %v905
        %v907 = vpop.f32.mrf.mxu0
        %v908 = vpop.f32.mrf.mxu0
        %v909 = vadd.f32 0.0, %v908
        %v910 = vpop.f32.mrf.mxu0
        %911 = vmatprep.mubr.bf16.mxu0 0
        %912 = vmatmul.mubr.bf16.gmra.mxu0 %v866
        %v913 = vpop.f32.mrf.mxu0
        %v914 = vadd.f32 0.0, %v913
        %v915 = vpop.f32.mrf.mxu0
        %v916 = vpop.f32.mrf.mxu0
        %v917 = vadd.f32 0.0, %v916
        %v918 = vpop.f32.mrf.mxu0
        %919 = vdwg.mxu0
        %v920 = vadd.f32 %v837, %v906
        %v921 = vadd.f32 %v838, %v909
        %v922 = vadd.f32 %v839, %v914
        %v923 = vadd.f32 %v840, %v917
        %v924 = vld [vmem:[%s2] sm:$0xff]
        %v925 = vld [vmem:[%s2 + $0x8] sm:$0xff]
        %v926 = vld [vmem:[%s2 + $0x10] sm:$0xff]
        %v927 = vld [vmem:[%s2 + $0x18] sm:$0xff]
        %929 = vset.pattern.permute.xlu0 0
        %930 = vperm.xlu0 %929, %v924
        %v931 = vpop.permute.xlu0 %930
        %934 = vset.pattern.permute.xlu0 0
        %935 = vperm.xlu0 %934, %v925
        %v936 = vpop.permute.xlu0 %935
        %939 = vset.pattern.permute.xlu0 0
        %940 = vperm.xlu0 %939, %v926
        %v941 = vpop.permute.xlu0 %940
        %944 = vset.pattern.permute.xlu0 0
        %945 = vperm.xlu0 %944, %v927
        %v946 = vpop.permute.xlu0 %945
        %v948 = vmul.f32 %v920, %v931
        %v949 = vmul.f32 %v921, %v936
        %v950 = vmul.f32 %v922, %v941
        %v951 = vmul.f32 %v923, %v946
        %v952 = vld [vmem:[%s3] sm:$0xff]
        %v953 = vld [vmem:[%s3 + $0x8] sm:$0xff]
        %v954 = vld [vmem:[%s3 + $0x10] sm:$0xff]
        %v955 = vld [vmem:[%s3 + $0x18] sm:$0xff]
        %957 = vset.pattern.permute.xlu0 0
        %958 = vperm.xlu0 %957, %v952
        %v959 = vpop.permute.xlu0 %958
        %962 = vset.pattern.permute.xlu0 0
        %963 = vperm.xlu0 %962, %v953
        %v964 = vpop.permute.xlu0 %963
        %967 = vset.pattern.permute.xlu0 0
        %968 = vperm.xlu0 %967, %v954
        %v969 = vpop.permute.xlu0 %968
        %972 = vset.pattern.permute.xlu0 0
        %973 = vperm.xlu0 %972, %v955
        %v974 = vpop.permute.xlu0 %973
        %v976 = vadd.f32 %v948, %v959
        %v977 = vadd.f32 %v949, %v964
        %v978 = vadd.f32 %v950, %v969
        %v979 = vadd.f32 %v951, %v974
        %vm980 = vcmp.gt.f32.partialorder %v976, 0.0
        %vm981 = vcmp.gt.f32.partialorder %v977, 0.0
        %vm982 = vcmp.gt.f32.partialorder %v978, 0.0
        %vm983 = vcmp.gt.f32.partialorder %v979, 0.0
        %v984 = vmul.f32 %v976, 0.2
        %v985 = vmul.f32 %v977, 0.2
        %v986 = vmul.f32 %v978, 0.2
        %v987 = vmul.f32 %v979, 0.2
        %v988 = vsel %vm980, %v976, %v984
        %v989 = vsel %vm981, %v977, %v985
        %v990 = vsel %vm982, %v978, %v986
        %v991 = vsel %vm983, %v979, %v987
        %v992 = vpack.c.bf16 %v989, %v988
        %v993 = vpack.c.bf16 %v991, %v990
        %v996 = vunpack.c.l.b16 %v992
        %v997 = vunpack.c.h.b16 %v992
        %v998 = vunpack.c.l.b16 %v993
        %v999 = vunpack.c.h.b16 %v993
        %v1000 = vpack.c.b16 %v996, %v996
        %v1001 = vpack.c.b16 %v997, %v997
        %v1002 = vpack.c.b16 %v998, %v998
        %v1003 = vpack.c.b16 %v999, %v999
        %1008 = vst [vmem:[%s175] sm:$0xf] %v1000
        %1009 = vst [vmem:[%s175 + $0x4] sm:$0xf] %v1001
        %1010 = vst [vmem:[%s175 + $0x8] sm:$0xf] %v1002
        %1011 = vst [vmem:[%s175 + $0xc] sm:$0xf] %v1003
        %s1012 = sand.u32 %s110, 1
        %s1013 = scalar_lea.sflag [#allocation3], %s1012
        %s1014 = sand.u32 %s110, 1
        %s1015 = smul.addr %s1014, 16
        %s1016 = scalar_lea.vmem [#allocation2], %s1015
        // Predicated region
        $region37: #{tpu_custom_call.1} parent=35 // pred_check
          %p1017 = pneg %p120
        $region38: #{tpu_custom_call.1} parent=35 // pred_check_branch
          %1019 = sbr.rel (%p1017) target = $region40
        $region39: #{tpu_custom_call.1} parent=35 // pred_region
          %s1021 = ssub.s32 256, 256
          %1022 = vsyncadd %s1013, %s1021
          %s1023 = smul.addr %s18, 64
          %s1024 = scalar_lea.hbm %s4, %s1023
          %s1025 = sshll.u32 %s1016, 4
          %s1026 = int_to_ptr.vmem [resolvable:$true] %s1025
          %1031 = dma.vmem_to_hbm [thread:$0]  %s1026, 256, %s1024, %s1013, 64, 128, 4
        $region40: #{tpu_custom_call.1} parent=35 // pred_fallthru
          _
      $region36: #{tpu_custom_call.1} parent=5 // pred_fallthru
        _
      %p1032 = scmp.le.s32.totalorder 2, %s13
      // Predicated region
      $region41: #{tpu_custom_call.1} parent=5 // pred_check
        %p1033 = pneg %p1032
      $region42: #{tpu_custom_call.1} parent=5 // pred_check_branch
        %1035 = sbr.rel (%p1033) target = $region44
      $region43: #{tpu_custom_call.1} parent=5 // pred_region
        %s1036 = ssub.s32 %s13, 2
        // Predicated region
        $region45: #{tpu_custom_call.1} parent=43 // pred_check
          %p1037 = pneg %p126
        $region46: #{tpu_custom_call.1} parent=43 // pred_check_branch
          %1039 = sbr.rel (%p1037) target = $region48
        $region47: #{tpu_custom_call.1} parent=43 // pred_region
          %s1040 = sand.u32 %s111, 1
          %s1041 = scalar_lea.sflag [#allocation3], %s1040
          %s1042 = sand.u32 %s111, 1
          %s1043 = smul.addr %s1042, 16
          %s1044 = scalar_lea.vmem [#allocation2], %s1043
          %1045 = dma.done %s1041, 256
        $region48: #{tpu_custom_call.1} parent=43 // pred_fallthru
          _
      $region44: #{tpu_custom_call.1} parent=5 // pred_fallthru
        _
    $region6: #{tpu_custom_call.1} parent=1 // loop_footer
      %s17 = sadd.s32 1, %s13
    $region7: #{tpu_custom_call.1} parent=1 // loop_footer_branch
      %12 = sbr.rel target = $region3
    $region8: #{tpu_custom_call.1} parent=1 // loop_exit
      _
    %1046 = vsyncpa [#allocation3], 1
    %s1047 = scalar_lea.sflag [#allocation3], 1
    %1048 = vsyncpa %s1047, 1

</llo_original>
